<compile_context>
chip_gen: v6e
topology: v6e:2x2x1
jax: 0.10.0
libtpu: 0.0.40
codegen_flags: <defaults>
</compile_context>

<pallas_src>
import functools

import jax
import jax.numpy as jnp
from jax import lax
from jax.experimental import pallas as pl
from jax.experimental.pallas import tpu as pltpu


def _round_up(x, m):
    return ((x + m - 1) // m) * m


def _lsce_kernel(x_ref, tgt_ref, out_ref, *, smoothing, n_classes, n_total,
                 block_rows):
    """One grid step = one row tile. Writes a lane-dense partial loss sum."""
    i = pl.program_id(0)

    x = x_ref[...].astype(jnp.float32)            # (TM, C)
    tm, c = x.shape

    eps = smoothing / (n_classes - 1)             # off-target mass per class
    w_t = 1.0 - smoothing - eps                   # extra mass at target class

    # --- per-row reductions; no (TM, C) log_probs / true_dist needed ---
    m = jnp.max(x, axis=-1, keepdims=True)                           # (TM, 1)
    lse = jnp.log(jnp.sum(jnp.exp(x - m), axis=-1, keepdims=True))   # (TM, 1)

    # Single fused weighted reduction replaces the previous sum(x) + x[target]
    # pair:  row_loss = (m + lse) - sum_c( (eps + w_t*[c==target]) * x_c )
    col = lax.broadcasted_iota(jnp.int32, (tm, c), 1)
    w = jnp.where(col == tgt_ref[...],
                  jnp.float32(eps + w_t), jnp.float32(eps))          # (TM, C)
    tail = jnp.sum(w * x, axis=-1, keepdims=True)                    # (TM, 1)

    row_loss = (m + lse) - tail

    # --- mask rows past the true batch size (tail tile of the cdiv grid) ---
    # Select-style masking so NaN/inf from padded garbage rows cannot leak.
    row_ids = i * block_rows + lax.broadcasted_iota(jnp.int32, (tm, 1), 0)
    row_loss = jnp.where(row_ids < n_total, row_loss, jnp.float32(0.0))

    tile_sum = jnp.sum(row_loss)

    # Lane-dense (1, 8, 128) partial: tile_sum at [0, 0, 0], zeros elsewhere.
    # (Per-tile cost only -- negligible next to the (TM, C) streaming work.)
    sub = lax.broadcasted_iota(jnp.int32, (1, 8, 128), 1)
    lane = lax.broadcasted_iota(jnp.int32, (1, 8, 128), 2)
    out_ref[...] = jnp.where((sub == 0) & (lane == 0), tile_sum,
                             jnp.float32(0.0))


def _vmem_budgets():
    """(tile_budget_bytes, vmem_limit_bytes) chosen from the chip's VMEM size."""
    cap = 64 * 1024 * 1024            # conservative default (v7x: 64 MiB / TC)
    try:
        cap = int(pltpu.get_tpu_info().vmem_capacity_bytes)
    except Exception:
        pass
    if cap > 96 * 1024 * 1024:
        # v5e / v6e class: 128 MiB physical VMEM -> big tiles, fewer grid steps.
        return 64 * 1024 * 1024, 100 * 1024 * 1024
    # v7x class: 64 MiB per TensorCore -> leave headroom for compiler scratch.
    return 22 * 1024 * 1024, 40 * 1024 * 1024


def _auto_block_rows(n, c, in_itemsize, tile_budget_bytes):
    """Largest row tile fitting a conservative per-row VMEM estimate.

    Per-row cost:
      2 pipeline buffers of the logits tile (input dtype)
    + 2 buffers of the (TM, 1) int32 target column (lane-padded to 128)
    + ~5 live 32-bit (TM, C) compiler temporaries in the body
      (f32 cast of x, exp(x-m), class iota, selected weight, weighted product).
    Bytes-based cap only (no fixed row cap): for small C this grows the tile
    into the multi-MiB range so the ~0.35 us per-grid-step overhead stops
    dominating the DMA time.
    """
    per_row = 2 * c * in_itemsize + 2 * 128 * 4 + 5 * c * 4
    tm = tile_budget_bytes // per_row
    tm = min(tm, _round_up(n, 8))     # never larger than the (padded) batch
    tm = max(8, (tm // 8) * 8)
    return tm


def label_smoothing_cross_entropy(logits, target, smoothing=0.1,
                                  block_rows=None):
    """logits: (N, C) float, target: (N,) int class ids. Returns scalar loss."""
    n, c = logits.shape
    assert c > 1, "label smoothing needs at least 2 classes"

    tile_budget, vmem_limit = _vmem_budgets()
    if block_rows is None:
        block_rows = _auto_block_rows(n, c, logits.dtype.itemsize, tile_budget)
    assert block_rows % 8 == 0
    num_tiles = -(-n // block_rows)

    tgt2d = target.astype(jnp.int32).reshape(n, 1)

    # TODO(synk): for vocab-sized C where even an (8, C) slab blows the VMEM
    # budget, add a second "arbitrary" class-tile grid axis with online
    # logsumexp / weighted-sum accumulators.
    # TODO(synk): on v7x, if profiling shows one TensorCore idle, switch the
    # row axis to pltpu.CORE_PARALLEL (plain "parallel" may not shard cores).
    kernel = functools.partial(
        _lsce_kernel, smoothing=float(smoothing), n_classes=c, n_total=n,
        block_rows=block_rows)

    cost = pl.CostEstimate(
        flops=8 * n * c,
        transcendentals=n * c,
        bytes_accessed=n * c * logits.dtype.itemsize + 4 * n
                       + 4 * num_tiles * 8 * 128,
    )

    partials = pl.pallas_call(
        kernel,
        out_shape=jax.ShapeDtypeStruct((num_tiles, 8, 128), jnp.float32),
        grid_spec=pltpu.PrefetchScalarGridSpec(
            num_scalar_prefetch=0,
            grid=(num_tiles,),
            in_specs=[
                pl.BlockSpec((block_rows, c), lambda i: (i, 0)),   # logits tile
                pl.BlockSpec((block_rows, 1), lambda i: (i, 0)),   # target tile
            ],
            out_specs=pl.BlockSpec((1, 8, 128), lambda i: (i, 0, 0)),
        ),
        compiler_params=pltpu.CompilerParams(
            dimension_semantics=("parallel",),        # no cross-tile state
            vmem_limit_bytes=vmem_limit,
        ),
        cost_estimate=cost,
    )(logits, tgt2d)

    # Tiny final reduction of per-tile partial sums outside the kernel.
    return jnp.sum(partials) / jnp.float32(n)


def _reference(logits, target, smoothing):
    n, c = logits.shape
    log_probs = jax.nn.log_softmax(logits.astype(jnp.float32), axis=-1)
    true_dist = jnp.full((n, c), smoothing / (c - 1), dtype=jnp.float32)
    true_dist = true_dist.at[jnp.arange(n), target].set(1.0 - smoothing)
    return jnp.mean(jnp.sum(-true_dist * log_probs, axis=-1))


if __name__ == "__main__":
    key = jax.random.PRNGKey(0)
    k1, k2, k3, k4 = jax.random.split(key, 4)

    # Case 1: small, divisible batch (auto tile size).
    N, C = 16, 32
    logits = jax.random.normal(k1, (N, C), dtype=jnp.float32)
    target = jax.random.randint(k2, (N,), 0, C, dtype=jnp.int32)
    loss = jax.block_until_ready(
        label_smoothing_cross_entropy(logits, target, smoothing=0.1))
    ref = _reference(logits, target, 0.1)
    assert jnp.allclose(loss, ref, atol=1e-5, rtol=1e-5), (loss, ref)

    # Case 2: batch not divisible by the tile (exercises tail masking).
    N2, C2 = 24, 32
    logits2 = jax.random.normal(k3, (N2, C2), dtype=jnp.float32)
    target2 = jax.random.randint(k4, (N2,), 0, C2, dtype=jnp.int32)
    loss2 = jax.block_until_ready(
        label_smoothing_cross_entropy(logits2, target2, smoothing=0.1,
                                      block_rows=16))
    ref2 = _reference(logits2, target2, 0.1)
    assert jnp.allclose(loss2, ref2, atol=1e-5, rtol=1e-5), (loss2, ref2)

    print("KERNEL_OK")
</pallas_src>

<mosaic_0001>
module attributes {stable_mosaic.version = 11 : i64} {
  func.func @_lsce_kernel(%arg0: i32, %arg1: memref<16x32xf32, #tpu.memory_space<vmem>>, %arg2: memref<16x1xi32, #tpu.memory_space<vmem>>, %arg3: memref<1x8x128xf32, #tpu.memory_space<vmem>>) attributes {dimension_semantics = [#tpu.dimension_semantics<parallel>], iteration_bounds = array<i64: 1>, scalar_prefetch = 0 : i64, scratch_operands = 0 : i64, tpu.core_type = #tpu.core_type<tc>, window_params = [{transform_indices = @transform_0, window_bounds = array<i64: 16, 32>}, {transform_indices = @transform_1, window_bounds = array<i64: 16, 1>}, {transform_indices = @transform_2, window_bounds = array<i64: 1, 8, 128>}]} {
    %c0 = arith.constant 0 : index
    %c0_0 = arith.constant 0 : index
    %0 = vector.load %arg1[%c0, %c0_0] : memref<16x32xf32, #tpu.memory_space<vmem>>, vector<16x32xf32>
    %cst = arith.constant dense<0xFF800000> : vector<16xf32>
    %1 = vector.multi_reduction <maximumf>, %0, %cst [1] : vector<16x32xf32> to vector<16xf32>
    %2 = vector.shape_cast %1 : vector<16xf32> to vector<16x1xf32>
    %3 = vector.broadcast %2 : vector<16x1xf32> to vector<16x32xf32>
    %4 = arith.subf %0, %3 : vector<16x32xf32>
    %5 = math.exp %4 : vector<16x32xf32>
    %cst_1 = arith.constant dense<0.000000e+00> : vector<16xf32>
    %6 = vector.multi_reduction <add>, %5, %cst_1 [1] : vector<16x32xf32> to vector<16xf32>
    %7 = vector.shape_cast %6 : vector<16xf32> to vector<16x1xf32>
    %8 = math.log %7 : vector<16x1xf32>
    %9 = tpu.iota {dimensions = array<i32: 1>} : vector<16x32xi32>
    %c0_2 = arith.constant 0 : index
    %c0_3 = arith.constant 0 : index
    %10 = vector.load %arg2[%c0_2, %c0_3] : memref<16x1xi32, #tpu.memory_space<vmem>>, vector<16x1xi32>
    %11 = vector.broadcast %10 : vector<16x1xi32> to vector<16x32xi32>
    %12 = arith.cmpi eq, %9, %11 : vector<16x32xi32>
    %cst_4 = arith.constant 0.899999976 : f32
    %cst_5 = arith.constant 0.0032258064 : f32
    %13 = vector.broadcast %cst_4 : f32 to vector<16x32xf32>
    %14 = vector.broadcast %cst_5 : f32 to vector<16x32xf32>
    %15 = arith.select %12, %13, %14 : vector<16x32xi1>, vector<16x32xf32>
    %16 = arith.mulf %15, %0 : vector<16x32xf32>
    %cst_6 = arith.constant dense<0.000000e+00> : vector<16xf32>
    %17 = vector.multi_reduction <add>, %16, %cst_6 [1] : vector<16x32xf32> to vector<16xf32>
    %18 = vector.shape_cast %17 : vector<16xf32> to vector<16x1xf32>
    %19 = arith.addf %2, %8 : vector<16x1xf32>
    %20 = arith.subf %19, %18 : vector<16x1xf32>
    %c16_i32 = arith.constant 16 : i32
    %21 = arith.muli %arg0, %c16_i32 : i32
    %22 = tpu.iota {dimensions = array<i32: 0>} : vector<16x1xi32>
    %23 = vector.broadcast %21 : i32 to vector<16x1xi32>
    %24 = arith.addi %23, %22 : vector<16x1xi32>
    %c16_i32_7 = arith.constant 16 : i32
    %25 = vector.broadcast %c16_i32_7 : i32 to vector<16x1xi32>
    %26 = arith.cmpi slt, %24, %25 : vector<16x1xi32>
    %cst_8 = arith.constant 0.000000e+00 : f32
    %27 = vector.broadcast %cst_8 : f32 to vector<16x1xf32>
    %28 = arith.select %26, %20, %27 : vector<16x1xi1>, vector<16x1xf32>
    %29 = vector.shape_cast %28 : vector<16x1xf32> to vector<1x16x1xf32>
    %cst_9 = arith.constant dense<0.000000e+00> : vector<1xf32>
    %30 = vector.multi_reduction <add>, %29, %cst_9 [1, 2] : vector<1x16x1xf32> to vector<1xf32>
    %31 = vector.shape_cast %30 : vector<1xf32> to vector<1x1x1xf32>
    %32 = vector.extract %31[0, 0, 0] : f32 from vector<1x1x1xf32>
    %33 = tpu.iota {dimensions = array<i32: 1>} : vector<1x8x128xi32>
    %34 = tpu.iota {dimensions = array<i32: 2>} : vector<1x8x128xi32>
    %c0_i32 = arith.constant 0 : i32
    %35 = vector.broadcast %c0_i32 : i32 to vector<1x8x128xi32>
    %36 = arith.cmpi eq, %33, %35 : vector<1x8x128xi32>
    %c0_i32_10 = arith.constant 0 : i32
    %37 = vector.broadcast %c0_i32_10 : i32 to vector<1x8x128xi32>
    %38 = arith.cmpi eq, %34, %37 : vector<1x8x128xi32>
    %39 = arith.andi %36, %38 : vector<1x8x128xi1>
    %cst_11 = arith.constant 0.000000e+00 : f32
    %40 = vector.broadcast %32 : f32 to vector<1x8x128xf32>
    %41 = vector.broadcast %cst_11 : f32 to vector<1x8x128xf32>
    %42 = arith.select %39, %40, %41 : vector<1x8x128xi1>, vector<1x8x128xf32>
    %c0_12 = arith.constant 0 : index
    %c0_13 = arith.constant 0 : index
    %c0_14 = arith.constant 0 : index
    %43 = vector.load %arg3[%c0_12, %c0_13, %c0_14] : memref<1x8x128xf32, #tpu.memory_space<vmem>>, vector<1x8x128xf32>
    tpu.vector_store %arg3[%c0_12, %c0_13, %c0_14], %42 {strides = array<i32>} : memref<1x8x128xf32, #tpu.memory_space<vmem>>, vector<1x8x128xf32>,
    return
  }
  func.func @transform_0(%arg0: i32) -> (i32, i32) {
    %c0_i32 = arith.constant 0 : i32
    %c0_i32_0 = arith.constant 0 : i32
    return %arg0, %c0_i32 : i32, i32
  }
  func.func @transform_1(%arg0: i32) -> (i32, i32) {
    %c0_i32 = arith.constant 0 : i32
    %c0_i32_0 = arith.constant 0 : i32
    return %arg0, %c0_i32 : i32, i32
  }
  func.func @transform_2(%arg0: i32) -> (i32, i32, i32) {
    %c0_i32 = arith.constant 0 : i32
    %c0_i32_0 = arith.constant 0 : i32
    %c0_i32_1 = arith.constant 0 : i32
    return %arg0, %c0_i32, %c0_i32_0 : i32, i32, i32
  }
}

</mosaic_0001>

<llo_original>
// kernel: tpu_custom_call.1
$region0: #{tpu_custom_call.1}
  #allocation0 [shape = 'u32[]', space=smem, size = 0x4, offset = 0x4, fixed_abs, tag = 'smem constant byte address 0x4 - core index']
  #allocation1 [shape = 'u32[144,128]{1,0:T(1,128)}', space=vmem, size = 0x12000, scoped, tag = 'internal scratch']
  %s0 = inlined_call_operand.vmem [shape: f32[16,32], index: 0, kind: input, shape index: {}]
  %s1 = inlined_call_operand.vmem [shape: s32[16,1], index: 1, kind: input, shape index: {}]
  %s2 = inlined_call_operand.hbm [shape: f32[1,8,128], index: 2, kind: output, shape index: {}]
  %s3 = sld [smem:[#allocation0]]
  $region18: #{tpu_custom_call.1} parent=0
    _
  %s5 = ssub.s32 1, %s3
  %s6 = scalar_select 0, %s5, %s3
  $region1: #{tpu_custom_call.1} parent=0
    #allocation2 [shape = 'u8[4096]{0}', space=vmem, size = 0x1000, scoped, tag = 'output window, operand 0, single buffered']
    #allocation3 [shape = 's32[1]{0}', space=sflag, size = 0x4, scoped, tag = 'scoped memory for tpu_custom_call.1']
    %7 = vsyncpa [#allocation3], 0
    // Predicated region
    $region2: #{tpu_custom_call.1} parent=1 // pred_check
      _
    $region3: #{tpu_custom_call.1} parent=1 // pred_check_branch
      %9 = sbr.rel (0) target = $region5
    $region4: #{tpu_custom_call.1} parent=1 // pred_region
      _
    $region5: #{tpu_custom_call.1} parent=1 // pred_fallthru
      _
    // Predicated region
    $region6: #{tpu_custom_call.1} parent=1 // pred_check
      _
    $region7: #{tpu_custom_call.1} parent=1 // pred_check_branch
      %11 = sbr.rel (0) target = $region9
    $region8: #{tpu_custom_call.1} parent=1 // pred_region
      _
    $region9: #{tpu_custom_call.1} parent=1 // pred_fallthru
      _
    %v12 = vld [vmem:[%s0] sm:$0xff]
    %v13 = vld [vmem:[%s0 + $0x8] sm:$0xff]
    %vm14 = vcmask 261120
    %v15 = vsel %vm14, %v12, -inf
    %16 = vmax.xlane.f32.xlu0 %v15
    %v17 = vpop.xlane.xlu0 %16
    %v18 = vsel %vm14, %v13, -inf
    %19 = vmax.xlane.f32.xlu0 %v18
    %v20 = vpop.xlane.xlu0 %19
    %v21 = vsub.f32 %v12, %v17
    %v22 = vsub.f32 %v13, %v20
    %v23 = vmul.f32 %v21, 1.442695
    %v24 = vpow.pop %v23
    %v25 = vmul.f32 %v22, 1.442695
    %v26 = vpow.pop %v25
    %v27 = vsel %vm14, %v24, 0.0
    %28 = vadd.xlane.f32.xlu0 %v27
    %v29 = vpop.xlane.xlu0 %28
    %v30 = vsel %vm14, %v26, 0.0
    %31 = vadd.xlane.f32.xlu0 %v30
    %v32 = vpop.xlane.xlu0 %31
    %v33 = vlog2.pop %v29
    %v34 = vmul.f32 %v33, 0.6931472
    %v35 = vlog2.pop %v32
    %v36 = vmul.f32 %v35, 0.6931472
    %v37 = vlaneseq
    %v38 = vand.u32 %v37, 127
    %v39 = vld [vmem:[%s1] sm:$0xff]
    %v40 = vld [vmem:[%s1 + $0x8] sm:$0xff]
    %41 = vset.pattern.permute.xlu0 0
    %42 = vperm.xlu0 %41, %v39
    %v43 = vpop.permute.xlu0 %42
    %44 = vset.pattern.permute.xlu0 0
    %45 = vperm.xlu0 %44, %v40
    %v46 = vpop.permute.xlu0 %45
    %vm47 = vcmp.eq.s32.totalorder %v38, %v43
    %vm48 = vcmp.eq.s32.totalorder %v38, %v46
    %v49 = vsel %vm47, 0.9, 0.0032258064
    %v50 = vsel %vm48, 0.9, 0.0032258064
    %v51 = vmul.f32 %v49, %v12
    %v52 = vmul.f32 %v50, %v13
    %v53 = vsel %vm14, %v51, 0.0
    %54 = vadd.xlane.f32.xlu0 %v53
    %v55 = vpop.xlane.xlu0 %54
    %v56 = vsel %vm14, %v52, 0.0
    %57 = vadd.xlane.f32.xlu0 %v56
    %v58 = vpop.xlane.xlu0 %57
    %v59 = vadd.f32 %v17, %v34
    %v60 = vadd.f32 %v20, %v36
    %v61 = vsub.f32 %v59, %v55
    %v62 = vsub.f32 %v60, %v58
    %s63 = smul.u32 0, 16
    %v64 = vlaneseq
    %v65 = vshrl.u32 %v64, 7
    %v66 = vadd.s32 %v65, 8
    %v67 = vstv %s63
    %v68 = vadd.s32 %v67, %v65
    %v69 = vadd.s32 %v67, %v66
    %vm70 = vcmp.lt.s32.totalorder %v68, 16
    %vm71 = vcmp.lt.s32.totalorder %v69, 16
    %v72 = vsel %vm70, %v61, 0.0
    %v73 = vsel %vm71, %v62, 0.0
    %vm74 = vcmask 7168
    %v75 = vsel %vm74, %v72, 0.0
    %v76 = vsel %vm74, %v73, 0.0
    %v77 = vadd.f32 %v75, %v76
    %78 = vadd.xlane.f32.xlu0 %v77
    %v79 = vpop.xlane.xlu0 %78
    %v80 = vrot.slane %v79, 4
    %v81 = vadd.f32 %v79, %v80
    %v82 = vrot.slane %v81, 2
    %v83 = vadd.f32 %v81, %v82
    %v84 = vrot.slane %v83, 1
    %v85 = vadd.f32 %v83, %v84
    %s86 = vtos %v85
    %vm87 = vcmp.eq.s32.totalorder %v65, 0
    %vm88 = vcmp.eq.s32.totalorder %v38, 0
    %vm89 = vmand %vm87, %vm88
    %v90 = vstv %s86
    %v91 = vsel %vm89, %v90, 0.0
    %92 = vst [vmem:[#allocation2] sm:$0xff] %v91
    // Predicated region
    $region10: #{tpu_custom_call.1} parent=1 // pred_check
      _
    $region11: #{tpu_custom_call.1} parent=1 // pred_check_branch
      %94 = sbr.rel (0) target = $region13
    $region12: #{tpu_custom_call.1} parent=1 // pred_region
      %s96 = ssub.s32 128, 128
      %97 = vsyncadd [#allocation3], %s96
      %s99 = sshll.u32 [#allocation2], 4
      %s100 = int_to_ptr.vmem [resolvable:$true] %s99
      %102 = dma.vmem_to_hbm [thread:$0]  %s100, 128, %s2, [#allocation3]
    $region13: #{tpu_custom_call.1} parent=1 // pred_fallthru
      _
    // Predicated region
    $region14: #{tpu_custom_call.1} parent=1 // pred_check
      _
    $region15: #{tpu_custom_call.1} parent=1 // pred_check_branch
      %104 = sbr.rel (0) target = $region17
    $region16: #{tpu_custom_call.1} parent=1 // pred_region
      %105 = dma.done [#allocation3], 128
    $region17: #{tpu_custom_call.1} parent=1 // pred_fallthru
      _
    %106 = vsyncpa [#allocation3], 1

</llo_original>
